<compile_context>
chip_gen: v5e
topology: v5e:2x2
jax: 0.10.0
libtpu: 0.0.40
codegen_flags: <defaults>
</compile_context>

<pallas_src>
import math

import jax
import jax.numpy as jnp
from jax import lax
from jax.experimental import pallas as pl
from jax.experimental.pallas import tpu as pltpu

LN_EPS = 1e-5


def _round_up(x, m):
    return (x + m - 1) // m * m


def _round_down(x, m):
    return x // m * m


def _pick_tile(bp, tile_m):
    """Row tile: multiple of 8, divides bp (so padding waste <= 7 rows), <= tile_m,
    and giving grid >= 2 whenever bp >= 16 (v7x megacore)."""
    cap = min(tile_m, bp)
    if bp >= 16:
        cap = min(cap, max(8, _round_down(bp // 2, 8)))
    cap = max(8, _round_down(cap, 8))
    tm = 8
    for cand in range(cap, 7, -8):
        if bp % cand == 0:
            tm = cand
            break
    return tm


# ----------------------------- fused kernels ------------------------------

def _refcoco_kernel_with_bbox(x_ref, bb_ref,
                              w1_ref, b1_ref, w2_ref, b2_ref, g_ref, beta_ref,
                              pw1_ref, pb1_ref, pw2_ref, pb2_ref,
                              o_ref):
    # spatial_encoder: Linear -> ReLU -> (Dropout = identity) -> Linear -> LayerNorm
    x = x_ref[...].astype(jnp.bfloat16)
    h = jnp.dot(x, w1_ref[...], preferred_element_type=jnp.float32) + b1_ref[...]
    h = jnp.maximum(h, 0.0)
    s = jnp.dot(h.astype(jnp.bfloat16), w2_ref[...],
                preferred_element_type=jnp.float32) + b2_ref[...]

    # one-pass LayerNorm statistics (f32)
    inv_e = 1.0 / s.shape[-1]
    mean = jnp.sum(s, axis=-1, keepdims=True) * inv_e
    ex2 = jnp.sum(s * s, axis=-1, keepdims=True) * inv_e
    var = jnp.maximum(ex2 - mean * mean, 0.0)
    s = (s - mean) * lax.rsqrt(var + LN_EPS) * g_ref[...] + beta_ref[...]

    # pos_encoder: K=4 first Linear as 4 unrolled VPU broadcast-FMAs (f32)
    bb = bb_ref[...].astype(jnp.float32)
    pw1 = pw1_ref[...]
    ph = (bb[:, 0:1] * pw1[0:1, :] + bb[:, 1:2] * pw1[1:2, :]
          + bb[:, 2:3] * pw1[2:3, :] + bb[:, 3:4] * pw1[3:4, :]) + pb1_ref[...]
    ph = jnp.maximum(ph, 0.0)
    p = jnp.dot(ph.astype(jnp.bfloat16), pw2_ref[...],
                preferred_element_type=jnp.float32) + pb2_ref[...]

    o_ref[...] = (s + p).astype(o_ref.dtype)


def _refcoco_kernel_no_bbox(x_ref,
                            w1_ref, b1_ref, w2_ref, b2_ref, g_ref, beta_ref,
                            o_ref):
    x = x_ref[...].astype(jnp.bfloat16)
    h = jnp.dot(x, w1_ref[...], preferred_element_type=jnp.float32) + b1_ref[...]
    h = jnp.maximum(h, 0.0)
    s = jnp.dot(h.astype(jnp.bfloat16), w2_ref[...],
                preferred_element_type=jnp.float32) + b2_ref[...]

    inv_e = 1.0 / s.shape[-1]
    mean = jnp.sum(s, axis=-1, keepdims=True) * inv_e
    ex2 = jnp.sum(s * s, axis=-1, keepdims=True) * inv_e
    var = jnp.maximum(ex2 - mean * mean, 0.0)
    o_ref[...] = ((s - mean) * lax.rsqrt(var + LN_EPS) * g_ref[...]
                  + beta_ref[...]).astype(o_ref.dtype)


# ----------------------------- wrapper ------------------------------

def refcoco_spatial_processor(spatial_features, params, bbox_coords=None,
                              tile_m=512, out_dtype=jnp.float32):
    """Fused forward. spatial_features: [B, spatial_dim]; bbox_coords: [B, 4] or None."""
    B, S = spatial_features.shape
    E2 = params['w1'].shape[1]
    E = params['w2'].shape[1]

    # pad contraction dim of the first MLP to a lane multiple (74 -> 128)
    Sp = _round_up(S, 128)
    # pad batch only up to a sublane multiple of 8; pick tile dividing Bp
    Bp = _round_up(max(B, 1), 8)
    tm = _pick_tile(Bp, tile_m)
    grid = (Bp // tm,)

    x = spatial_features
    if Bp != B or Sp != S:
        x = jnp.pad(x, ((0, Bp - B), (0, Sp - S)))

    # weights for MXU in bf16; biases / LN params / tiny pw1 stay f32
    w1 = params['w1']
    if Sp != S:
        w1 = jnp.pad(w1, ((0, Sp - S), (0, 0)))
    w1 = w1.astype(jnp.bfloat16)
    w2 = params['w2'].astype(jnp.bfloat16)
    b1 = params['b1'].reshape(1, -1).astype(jnp.float32)
    b2 = params['b2'].reshape(1, -1).astype(jnp.float32)
    g = params['ln_g'].reshape(1, -1).astype(jnp.float32)
    beta = params['ln_b'].reshape(1, -1).astype(jnp.float32)

    def row(feat):       # batch-tiled activation spec
        return pl.BlockSpec((tm, feat), lambda i: (i, 0))

    def rep(arr):        # weight/bias replicated across row tiles
        return pl.BlockSpec(arr.shape, lambda i: (0,) * arr.ndim)

    cparams = pltpu.CompilerParams(dimension_semantics=("parallel",))
    out_itemsize = jnp.dtype(out_dtype).itemsize

    if bbox_coords is None:
        flops = 2 * Bp * (Sp * E2 + E2 * E)
        bytes_accessed = int(
            x.size * x.dtype.itemsize
            + w1.size * w1.dtype.itemsize + w2.size * w2.dtype.itemsize
            + (b1.size + b2.size + g.size + beta.size) * 4
            + Bp * E * out_itemsize)
        out = pl.pallas_call(
            _refcoco_kernel_no_bbox,
            out_shape=jax.ShapeDtypeStruct((Bp, E), out_dtype),
            grid=grid,
            in_specs=[row(Sp), rep(w1), rep(b1), rep(w2), rep(b2), rep(g), rep(beta)],
            out_specs=row(E),
            compiler_params=cparams,
            cost_estimate=pl.CostEstimate(flops=int(flops), transcendentals=0,
                                          bytes_accessed=bytes_accessed),
        )(x, w1, b1, w2, b2, g, beta)
    else:
        E4 = params['pw1'].shape[1]
        bb = bbox_coords
        if Bp != B:
            bb = jnp.pad(bb, ((0, Bp - B), (0, 0)))
        pw1 = params['pw1'].astype(jnp.float32)          # tiny, used on the VPU
        pb1 = params['pb1'].reshape(1, -1).astype(jnp.float32)
        pw2 = params['pw2'].astype(jnp.bfloat16)
        pb2 = params['pb2'].reshape(1, -1).astype(jnp.float32)

        flops = 2 * Bp * (Sp * E2 + E2 * E + 4 * E4 + E4 * E)
        bytes_accessed = int(
            x.size * x.dtype.itemsize + bb.size * bb.dtype.itemsize
            + w1.size * w1.dtype.itemsize + w2.size * w2.dtype.itemsize
            + pw2.size * pw2.dtype.itemsize + pw1.size * 4
            + (b1.size + b2.size + g.size + beta.size + pb1.size + pb2.size) * 4
            + Bp * E * out_itemsize)
        out = pl.pallas_call(
            _refcoco_kernel_with_bbox,
            out_shape=jax.ShapeDtypeStruct((Bp, E), out_dtype),
            grid=grid,
            in_specs=[row(Sp), row(4),
                      rep(w1), rep(b1), rep(w2), rep(b2), rep(g), rep(beta),
                      rep(pw1), rep(pb1), rep(pw2), rep(pb2)],
            out_specs=row(E),
            compiler_params=cparams,
            cost_estimate=pl.CostEstimate(flops=int(flops), transcendentals=0,
                                          bytes_accessed=bytes_accessed),
        )(x, bb, w1, b1, w2, b2, g, beta, pw1, pb1, pw2, pb2)

    return out[:B]


# ----------------------------- pure-JAX reference ------------------------------

def refcoco_reference(spatial_features, params, bbox_coords=None):
    h = jnp.maximum(spatial_features @ params['w1'] + params['b1'], 0.0)
    s = h @ params['w2'] + params['b2']
    mean = jnp.mean(s, axis=-1, keepdims=True)
    var = jnp.mean((s - mean) ** 2, axis=-1, keepdims=True)
    s = (s - mean) / jnp.sqrt(var + LN_EPS) * params['ln_g'] + params['ln_b']
    if bbox_coords is not None:
        ph = jnp.maximum(bbox_coords @ params['pw1'] + params['pb1'], 0.0)
        s = s + ph @ params['pw2'] + params['pb2']
    return s


# ----------------------------- deterministic params ------------------------------

def init_params(key, spatial_dim=74, embed_dim=512):
    ks = jax.random.split(key, 4)

    def linear_init(k, fan_in, fan_out):
        bound = 1.0 / math.sqrt(fan_in)
        kw, kb = jax.random.split(k)
        w = jax.random.uniform(kw, (fan_in, fan_out), jnp.float32, -bound, bound)
        b = jax.random.uniform(kb, (fan_out,), jnp.float32, -bound, bound)
        return w, b

    w1, b1 = linear_init(ks[0], spatial_dim, embed_dim // 2)
    w2, b2 = linear_init(ks[1], embed_dim // 2, embed_dim)
    pw1, pb1 = linear_init(ks[2], 4, embed_dim // 4)
    pw2, pb2 = linear_init(ks[3], embed_dim // 4, embed_dim)
    return {
        'w1': w1, 'b1': b1,
        'w2': w2, 'b2': b2,
        'ln_g': jnp.ones((embed_dim,), jnp.float32),
        'ln_b': jnp.zeros((embed_dim,), jnp.float32),
        'pw1': pw1, 'pb1': pb1,
        'pw2': pw2, 'pb2': pb2,
    }


# ----------------------------- main ------------------------------

if __name__ == "__main__":
    # TODO(synk): nn.Dropout(0.1) inside spatial_encoder is treated as identity (inference mode).
    B, spatial_dim, embed_dim = 8, 74, 512
    key = jax.random.PRNGKey(0)
    kx, kb, kp = jax.random.split(key, 3)

    spatial_features = jax.random.normal(kx, (B, spatial_dim), dtype=jnp.float32)
    bbox_coords = jax.random.uniform(kb, (B, 4), dtype=jnp.float32)
    params = init_params(kp, spatial_dim, embed_dim)

    out_bbox = refcoco_spatial_processor(spatial_features, params, bbox_coords)
    out_plain = refcoco_spatial_processor(spatial_features, params, None)
    jax.block_until_ready(out_bbox)
    jax.block_until_ready(out_plain)

    ref_bbox = refcoco_reference(spatial_features, params, bbox_coords)
    ref_plain = refcoco_reference(spatial_features, params, None)
    assert out_bbox.shape == (B, embed_dim) and out_plain.shape == (B, embed_dim)
    assert jnp.allclose(out_bbox, ref_bbox, atol=5e-2, rtol=5e-2)
    assert jnp.allclose(out_plain, ref_plain, atol=5e-2, rtol=5e-2)

    print("KERNEL_OK")
</pallas_src>

<mosaic_0001>
module attributes {stable_mosaic.version = 11 : i64} {
  func.func @_refcoco_kernel_with_bbox(%arg0: i32, %arg1: memref<8x128xf32, #tpu.memory_space<vmem>>, %arg2: memref<8x4xf32, #tpu.memory_space<vmem>>, %arg3: memref<128x256xbf16, #tpu.memory_space<vmem>>, %arg4: memref<1x256xf32, #tpu.memory_space<vmem>>, %arg5: memref<256x512xbf16, #tpu.memory_space<vmem>>, %arg6: memref<1x512xf32, #tpu.memory_space<vmem>>, %arg7: memref<1x512xf32, #tpu.memory_space<vmem>>, %arg8: memref<1x512xf32, #tpu.memory_space<vmem>>, %arg9: memref<4x128xf32, #tpu.memory_space<vmem>>, %arg10: memref<1x128xf32, #tpu.memory_space<vmem>>, %arg11: memref<128x512xbf16, #tpu.memory_space<vmem>>, %arg12: memref<1x512xf32, #tpu.memory_space<vmem>>, %arg13: memref<8x512xf32, #tpu.memory_space<vmem>>) attributes {dimension_semantics = [#tpu.dimension_semantics<parallel>], iteration_bounds = array<i64: 1>, scalar_prefetch = 0 : i64, scratch_operands = 0 : i64, tpu.core_type = #tpu.core_type<tc>, window_params = [{transform_indices = @transform_0, window_bounds = array<i64: 8, 128>}, {transform_indices = @transform_1, window_bounds = array<i64: 8, 4>}, {pipeline_mode = #tpu.pipeline_mode<synchronous>, transform_indices = @transform_2, window_bounds = array<i64: 128, 256>}, {pipeline_mode = #tpu.pipeline_mode<synchronous>, transform_indices = @transform_3, window_bounds = array<i64: 1, 256>}, {pipeline_mode = #tpu.pipeline_mode<synchronous>, transform_indices = @transform_4, window_bounds = array<i64: 256, 512>}, {pipeline_mode = #tpu.pipeline_mode<synchronous>, transform_indices = @transform_5, window_bounds = array<i64: 1, 512>}, {pipeline_mode = #tpu.pipeline_mode<synchronous>, transform_indices = @transform_6, window_bounds = array<i64: 1, 512>}, {pipeline_mode = #tpu.pipeline_mode<synchronous>, transform_indices = @transform_7, window_bounds = array<i64: 1, 512>}, {pipeline_mode = #tpu.pipeline_mode<synchronous>, transform_indices = @transform_8, window_bounds = array<i64: 4, 128>}, {pipeline_mode = #tpu.pipeline_mode<synchronous>, transform_indices = @transform_9, window_bounds = array<i64: 1, 128>}, {pipeline_mode = #tpu.pipeline_mode<synchronous>, transform_indices = @transform_10, window_bounds = array<i64: 128, 512>}, {pipeline_mode = #tpu.pipeline_mode<synchronous>, transform_indices = @transform_11, window_bounds = array<i64: 1, 512>}, {transform_indices = @transform_12, window_bounds = array<i64: 8, 512>}]} {
    %c0 = arith.constant 0 : index
    %c0_0 = arith.constant 0 : index
    %0 = vector.load %arg1[%c0, %c0_0] : memref<8x128xf32, #tpu.memory_space<vmem>>, vector<8x128xf32>
    %1 = arith.truncf %0 : vector<8x128xf32> to vector<8x128xbf16>
    %c0_1 = arith.constant 0 : index
    %c0_2 = arith.constant 0 : index
    %2 = vector.load %arg3[%c0_1, %c0_2] : memref<128x256xbf16, #tpu.memory_space<vmem>>, vector<128x256xbf16>
    %cst = arith.constant dense<0.000000e+00> : vector<8x256xf32>
    %3 = tpu.matmul %1, %2, %cst {dimension_numbers = #tpu.dot_dimension_numbers<[1], [0], [0], [1], [0, 0, 1, 1], [], []>} : vector<8x128xbf16>, vector<128x256xbf16>, vector<8x256xf32> -> vector<8x256xf32>
    %c0_3 = arith.constant 0 : index
    %c0_4 = arith.constant 0 : index
    %4 = vector.load %arg4[%c0_3, %c0_4] : memref<1x256xf32, #tpu.memory_space<vmem>>, vector<1x256xf32>
    %5 = vector.broadcast %4 : vector<1x256xf32> to vector<8x256xf32>
    %6 = arith.addf %3, %5 : vector<8x256xf32>
    %cst_5 = arith.constant 0.000000e+00 : f32
    %7 = vector.broadcast %cst_5 : f32 to vector<8x256xf32>
    %8 = arith.maximumf %6, %7 : vector<8x256xf32>
    %9 = arith.truncf %8 : vector<8x256xf32> to vector<8x256xbf16>
    %c0_6 = arith.constant 0 : index
    %c0_7 = arith.constant 0 : index
    %10 = vector.load %arg5[%c0_6, %c0_7] : memref<256x512xbf16, #tpu.memory_space<vmem>>, vector<256x512xbf16>
    %cst_8 = arith.constant dense<0.000000e+00> : vector<8x512xf32>
    %11 = tpu.matmul %9, %10, %cst_8 {dimension_numbers = #tpu.dot_dimension_numbers<[1], [0], [0], [1], [0, 0, 1, 1], [], []>} : vector<8x256xbf16>, vector<256x512xbf16>, vector<8x512xf32> -> vector<8x512xf32>
    %c0_9 = arith.constant 0 : index
    %c0_10 = arith.constant 0 : index
    %12 = vector.load %arg6[%c0_9, %c0_10] : memref<1x512xf32, #tpu.memory_space<vmem>>, vector<1x512xf32>
    %13 = vector.broadcast %12 : vector<1x512xf32> to vector<8x512xf32>
    %14 = arith.addf %11, %13 : vector<8x512xf32>
    %cst_11 = arith.constant dense<0.000000e+00> : vector<8xf32>
    %15 = vector.multi_reduction <add>, %14, %cst_11 [1] : vector<8x512xf32> to vector<8xf32>
    %16 = vector.shape_cast %15 : vector<8xf32> to vector<8x1xf32>
    %cst_12 = arith.constant 0.001953125 : f32
    %17 = vector.broadcast %cst_12 : f32 to vector<8x1xf32>
    %18 = arith.mulf %16, %17 : vector<8x1xf32>
    %19 = arith.mulf %14, %14 : vector<8x512xf32>
    %cst_13 = arith.constant dense<0.000000e+00> : vector<8xf32>
    %20 = vector.multi_reduction <add>, %19, %cst_13 [1] : vector<8x512xf32> to vector<8xf32>
    %21 = vector.shape_cast %20 : vector<8xf32> to vector<8x1xf32>
    %cst_14 = arith.constant 0.001953125 : f32
    %22 = vector.broadcast %cst_14 : f32 to vector<8x1xf32>
    %23 = arith.mulf %21, %22 : vector<8x1xf32>
    %24 = arith.mulf %18, %18 : vector<8x1xf32>
    %25 = arith.subf %23, %24 : vector<8x1xf32>
    %cst_15 = arith.constant 0.000000e+00 : f32
    %26 = vector.broadcast %cst_15 : f32 to vector<8x1xf32>
    %27 = arith.maximumf %25, %26 : vector<8x1xf32>
    %28 = vector.broadcast %18 : vector<8x1xf32> to vector<8x512xf32>
    %29 = arith.subf %14, %28 : vector<8x512xf32>
    %cst_16 = arith.constant 9.99999974E-6 : f32
    %30 = vector.broadcast %cst_16 : f32 to vector<8x1xf32>
    %31 = arith.addf %27, %30 : vector<8x1xf32>
    %32 = math.rsqrt %31 : vector<8x1xf32>
    %33 = vector.broadcast %32 : vector<8x1xf32> to vector<8x512xf32>
    %34 = arith.mulf %29, %33 : vector<8x512xf32>
    %c0_17 = arith.constant 0 : index
    %c0_18 = arith.constant 0 : index
    %35 = vector.load %arg7[%c0_17, %c0_18] : memref<1x512xf32, #tpu.memory_space<vmem>>, vector<1x512xf32>
    %36 = vector.broadcast %35 : vector<1x512xf32> to vector<8x512xf32>
    %37 = arith.mulf %34, %36 : vector<8x512xf32>
    %c0_19 = arith.constant 0 : index
    %c0_20 = arith.constant 0 : index
    %38 = vector.load %arg8[%c0_19, %c0_20] : memref<1x512xf32, #tpu.memory_space<vmem>>, vector<1x512xf32>
    %39 = vector.broadcast %38 : vector<1x512xf32> to vector<8x512xf32>
    %40 = arith.addf %37, %39 : vector<8x512xf32>
    %c0_21 = arith.constant 0 : index
    %c0_22 = arith.constant 0 : index
    %41 = vector.load %arg2[%c0_21, %c0_22] : memref<8x4xf32, #tpu.memory_space<vmem>>, vector<8x4xf32>
    %c0_23 = arith.constant 0 : index
    %c0_24 = arith.constant 0 : index
    %42 = vector.load %arg9[%c0_23, %c0_24] : memref<4x128xf32, #tpu.memory_space<vmem>>, vector<4x128xf32>
    %43 = vector.extract_strided_slice %41 {offsets = [0, 0], sizes = [8, 1], strides = [1, 1]} : vector<8x4xf32> to vector<8x1xf32>
    %44 = vector.extract_strided_slice %42 {offsets = [0, 0], sizes = [1, 128], strides = [1, 1]} : vector<4x128xf32> to vector<1x128xf32>
    %45 = vector.broadcast %43 : vector<8x1xf32> to vector<8x128xf32>
    %46 = vector.broadcast %44 : vector<1x128xf32> to vector<8x128xf32>
    %47 = arith.mulf %45, %46 : vector<8x128xf32>
    %48 = vector.extract_strided_slice %41 {offsets = [0, 1], sizes = [8, 1], strides = [1, 1]} : vector<8x4xf32> to vector<8x1xf32>
    %49 = vector.extract_strided_slice %42 {offsets = [1, 0], sizes = [1, 128], strides = [1, 1]} : vector<4x128xf32> to vector<1x128xf32>
    %50 = vector.broadcast %48 : vector<8x1xf32> to vector<8x128xf32>
    %51 = vector.broadcast %49 : vector<1x128xf32> to vector<8x128xf32>
    %52 = arith.mulf %50, %51 : vector<8x128xf32>
    %53 = arith.addf %47, %52 : vector<8x128xf32>
    %54 = vector.extract_strided_slice %41 {offsets = [0, 2], sizes = [8, 1], strides = [1, 1]} : vector<8x4xf32> to vector<8x1xf32>
    %55 = vector.extract_strided_slice %42 {offsets = [2, 0], sizes = [1, 128], strides = [1, 1]} : vector<4x128xf32> to vector<1x128xf32>
    %56 = vector.broadcast %54 : vector<8x1xf32> to vector<8x128xf32>
    %57 = vector.broadcast %55 : vector<1x128xf32> to vector<8x128xf32>
    %58 = arith.mulf %56, %57 : vector<8x128xf32>
    %59 = arith.addf %53, %58 : vector<8x128xf32>
    %60 = vector.extract_strided_slice %41 {offsets = [0, 3], sizes = [8, 1], strides = [1, 1]} : vector<8x4xf32> to vector<8x1xf32>
    %61 = vector.extract_strided_slice %42 {offsets = [3, 0], sizes = [1, 128], strides = [1, 1]} : vector<4x128xf32> to vector<1x128xf32>
    %62 = vector.broadcast %60 : vector<8x1xf32> to vector<8x128xf32>
    %63 = vector.broadcast %61 : vector<1x128xf32> to vector<8x128xf32>
    %64 = arith.mulf %62, %63 : vector<8x128xf32>
    %65 = arith.addf %59, %64 : vector<8x128xf32>
    %c0_25 = arith.constant 0 : index
    %c0_26 = arith.constant 0 : index
    %66 = vector.load %arg10[%c0_25, %c0_26] : memref<1x128xf32, #tpu.memory_space<vmem>>, vector<1x128xf32>
    %67 = vector.broadcast %66 : vector<1x128xf32> to vector<8x128xf32>
    %68 = arith.addf %65, %67 : vector<8x128xf32>
    %cst_27 = arith.constant 0.000000e+00 : f32
    %69 = vector.broadcast %cst_27 : f32 to vector<8x128xf32>
    %70 = arith.maximumf %68, %69 : vector<8x128xf32>
    %71 = arith.truncf %70 : vector<8x128xf32> to vector<8x128xbf16>
    %c0_28 = arith.constant 0 : index
    %c0_29 = arith.constant 0 : index
    %72 = vector.load %arg11[%c0_28, %c0_29] : memref<128x512xbf16, #tpu.memory_space<vmem>>, vector<128x512xbf16>
    %cst_30 = arith.constant dense<0.000000e+00> : vector<8x512xf32>
    %73 = tpu.matmul %71, %72, %cst_30 {dimension_numbers = #tpu.dot_dimension_numbers<[1], [0], [0], [1], [0, 0, 1, 1], [], []>} : vector<8x128xbf16>, vector<128x512xbf16>, vector<8x512xf32> -> vector<8x512xf32>
    %c0_31 = arith.constant 0 : index
    %c0_32 = arith.constant 0 : index
    %74 = vector.load %arg12[%c0_31, %c0_32] : memref<1x512xf32, #tpu.memory_space<vmem>>, vector<1x512xf32>
    %75 = vector.broadcast %74 : vector<1x512xf32> to vector<8x512xf32>
    %76 = arith.addf %73, %75 : vector<8x512xf32>
    %77 = arith.addf %40, %76 : vector<8x512xf32>
    %c0_33 = arith.constant 0 : index
    %c0_34 = arith.constant 0 : index
    %78 = vector.load %arg13[%c0_33, %c0_34] : memref<8x512xf32, #tpu.memory_space<vmem>>, vector<8x512xf32>
    tpu.vector_store %arg13[%c0_33, %c0_34], %77 {strides = array<i32>} : memref<8x512xf32, #tpu.memory_space<vmem>>, vector<8x512xf32>,
    return
  }
  func.func @transform_0(%arg0: i32) -> (i32, i32) {
    %c0_i32 = arith.constant 0 : i32
    %c0_i32_0 = arith.constant 0 : i32
    return %arg0, %c0_i32 : i32, i32
  }
  func.func @transform_1(%arg0: i32) -> (i32, i32) {
    %c0_i32 = arith.constant 0 : i32
    %c0_i32_0 = arith.constant 0 : i32
    return %arg0, %c0_i32 : i32, i32
  }
  func.func @transform_2(%arg0: i32) -> (i32, i32) {
    %c0_i32 = arith.constant 0 : i32
    %c0_i32_0 = arith.constant 0 : i32
    %c0_i32_1 = arith.constant 0 : i32
    return %c0_i32, %c0_i32_0 : i32, i32
  }
  func.func @transform_3(%arg0: i32) -> (i32, i32) {
    %c0_i32 = arith.constant 0 : i32
    %c0_i32_0 = arith.constant 0 : i32
    %c0_i32_1 = arith.constant 0 : i32
    return %c0_i32, %c0_i32_0 : i32, i32
  }
  func.func @transform_4(%arg0: i32) -> (i32, i32) {
    %c0_i32 = arith.constant 0 : i32
    %c0_i32_0 = arith.constant 0 : i32
    %c0_i32_1 = arith.constant 0 : i32
    return %c0_i32, %c0_i32_0 : i32, i32
  }
  func.func @transform_5(%arg0: i32) -> (i32, i32) {
    %c0_i32 = arith.constant 0 : i32
    %c0_i32_0 = arith.constant 0 : i32
    %c0_i32_1 = arith.constant 0 : i32
    return %c0_i32, %c0_i32_0 : i32, i32
  }
  func.func @transform_6(%arg0: i32) -> (i32, i32) {
    %c0_i32 = arith.constant 0 : i32
    %c0_i32_0 = arith.constant 0 : i32
    %c0_i32_1 = arith.constant 0 : i32
    return %c0_i32, %c0_i32_0 : i32, i32
  }
  func.func @transform_7(%arg0: i32) -> (i32, i32) {
    %c0_i32 = arith.constant 0 : i32
    %c0_i32_0 = arith.constant 0 : i32
    %c0_i32_1 = arith.constant 0 : i32
    return %c0_i32, %c0_i32_0 : i32, i32
  }
  func.func @transform_8(%arg0: i32) -> (i32, i32) {
    %c0_i32 = arith.constant 0 : i32
    %c0_i32_0 = arith.constant 0 : i32
    %c0_i32_1 = arith.constant 0 : i32
    return %c0_i32, %c0_i32_0 : i32, i32
  }
  func.func @transform_9(%arg0: i32) -> (i32, i32) {
    %c0_i32 = arith.constant 0 : i32
    %c0_i32_0 = arith.constant 0 : i32
    %c0_i32_1 = arith.constant 0 : i32
    return %c0_i32, %c0_i32_0 : i32, i32
  }
  func.func @transform_10(%arg0: i32) -> (i32, i32) {
    %c0_i32 = arith.constant 0 : i32
    %c0_i32_0 = arith.constant 0 : i32
    %c0_i32_1 = arith.constant 0 : i32
    return %c0_i32, %c0_i32_0 : i32, i32
  }
  func.func @transform_11(%arg0: i32) -> (i32, i32) {
    %c0_i32 = arith.constant 0 : i32
    %c0_i32_0 = arith.constant 0 : i32
    %c0_i32_1 = arith.constant 0 : i32
    return %c0_i32, %c0_i32_0 : i32, i32
  }
  func.func @transform_12(%arg0: i32) -> (i32, i32) {
    %c0_i32 = arith.constant 0 : i32
    %c0_i32_0 = arith.constant 0 : i32
    return %arg0, %c0_i32 : i32, i32
  }
}

</mosaic_0001>

<llo_original>
// kernel: tpu_custom_call.1
$region0: #{tpu_custom_call.1}
  #allocation0 [shape = 'u32[]', space=smem, size = 0x4, offset = 0x4, fixed_abs, tag = 'smem constant byte address 0x4 - core index']
  #allocation1 [shape = 'u32[72,128]{1,0:T(1,128)}', space=vmem, size = 0x9000, scoped, tag = 'internal scratch']
  %s0 = inlined_call_operand.vmem [shape: f32[8,128], index: 0, kind: input, shape index: {}]
  %s1 = inlined_call_operand.vmem [shape: f32[8,4], index: 1, kind: input, shape index: {}]
  %s2 = inlined_call_operand.hbm [shape: bf16[128,256], index: 2, kind: input, shape index: {}]
  %s3 = inlined_call_operand.hbm [shape: f32[1,256], index: 3, kind: input, shape index: {}]
  %s4 = inlined_call_operand.hbm [shape: bf16[256,512], index: 4, kind: input, shape index: {}]
  %s5 = inlined_call_operand.vmem [shape: f32[1,512], index: 5, kind: input, shape index: {}]
  %s6 = inlined_call_operand.vmem [shape: f32[1,512], index: 6, kind: input, shape index: {}]
  %s7 = inlined_call_operand.hbm [shape: f32[1,512], index: 7, kind: input, shape index: {}]
  %s8 = inlined_call_operand.hbm [shape: f32[4,128], index: 8, kind: input, shape index: {}]
  %s9 = inlined_call_operand.hbm [shape: f32[1,128], index: 9, kind: input, shape index: {}]
  %s10 = inlined_call_operand.hbm [shape: bf16[128,512], index: 10, kind: input, shape index: {}]
  %s11 = inlined_call_operand.vmem [shape: f32[1,512], index: 11, kind: input, shape index: {}]
  %s12 = inlined_call_operand.hbm [shape: f32[8,512], index: 12, kind: output, shape index: {}]
  %s13 = sld [smem:[#allocation0]]
  $region86: #{tpu_custom_call.1} parent=0
    _
  %s15 = ssub.s32 1, %s13
  %s16 = scalar_select 0, %s15, %s13
  $region1: #{tpu_custom_call.1} parent=0
    #allocation2 [shape = 'u8[65536]{0}', space=vmem, size = 0x10000, scoped, tag = 'input window, operand 2, single buffered']
    #allocation3 [shape = 's32[1]{0}', space=sflag, size = 0x4, scoped, tag = 'scoped memory for tpu_custom_call.1']
    #allocation4 [shape = 's32[1]{0}', space=sflag, size = 0x4, scoped, tag = 'scoped memory for tpu_custom_call.1']
    #allocation5 [shape = 'u8[1024]{0}', space=vmem, size = 0x400, scoped, tag = 'input window, operand 3, single buffered']
    #allocation6 [shape = 's32[1]{0}', space=sflag, size = 0x4, scoped, tag = 'scoped memory for tpu_custom_call.1']
    #allocation7 [shape = 'u8[262144]{0}', space=vmem, size = 0x40000, scoped, tag = 'input window, operand 4, single buffered']
    #allocation8 [shape = 'u8[2048]{0}', space=vmem, size = 0x800, scoped, tag = 'input window, operand 7, single buffered']
    #allocation9 [shape = 's32[1]{0}', space=sflag, size = 0x4, scoped, tag = 'scoped memory for tpu_custom_call.1']
    #allocation10 [shape = 'u8[2048]{0}', space=vmem, size = 0x800, scoped, tag = 'input window, operand 8, single buffered']
    #allocation11 [shape = 'u8[512]{0}', space=vmem, size = 0x400, scoped, tag = 'input window, operand 9, single buffered']
    #allocation12 [shape = 's32[1]{0}', space=sflag, size = 0x4, scoped, tag = 'scoped memory for tpu_custom_call.1']
    #allocation13 [shape = 'u8[131072]{0}', space=vmem, size = 0x20000, scoped, tag = 'input window, operand 10, single buffered']
    #allocation14 [shape = 'u8[16384]{0}', space=vmem, size = 0x4000, scoped, tag = 'output window, operand 0, single buffered']
    %17 = vsyncpa [#allocation3], 0
    %18 = vsyncpa [#allocation6], 0
    %19 = vsyncpa [#allocation9], 0
    %20 = vsyncpa [#allocation12], 0
    %21 = vsyncpa [#allocation4], 0
    // Predicated region
    $region2: #{tpu_custom_call.1} parent=1 // pred_check
      _
    $region3: #{tpu_custom_call.1} parent=1 // pred_check_branch
      %23 = sbr.rel (0) target = $region5
    $region4: #{tpu_custom_call.1} parent=1 // pred_region
      _
    $region5: #{tpu_custom_call.1} parent=1 // pred_fallthru
      _
    // Predicated region
    $region6: #{tpu_custom_call.1} parent=1 // pred_check
      _
    $region7: #{tpu_custom_call.1} parent=1 // pred_check_branch
      %25 = sbr.rel (0) target = $region9
    $region8: #{tpu_custom_call.1} parent=1 // pred_region
      _
    $region9: #{tpu_custom_call.1} parent=1 // pred_fallthru
      _
    // Predicated region
    $region10: #{tpu_custom_call.1} parent=1 // pred_check
      _
    $region11: #{tpu_custom_call.1} parent=1 // pred_check_branch
      %27 = sbr.rel (0) target = $region13
    $region12: #{tpu_custom_call.1} parent=1 // pred_region
      %29 = vsyncadd [#allocation3], 0
      %s30 = sshll.u32 %s2, 4
      %s31 = int_to_ptr.hbm [resolvable:$true] %s30
      %s32 = sshll.u32 [#allocation2], 4
      %s33 = int_to_ptr.vmem [resolvable:$true] %s32
      %38 = dma.hbm_to_vmem [thread:$0]  %s31, 2048, %s33, [#allocation3], 128, 128, 8
    $region13: #{tpu_custom_call.1} parent=1 // pred_fallthru
      _
    // Predicated region
    $region14: #{tpu_custom_call.1} parent=1 // pred_check
      _
    $region15: #{tpu_custom_call.1} parent=1 // pred_check_branch
      %40 = sbr.rel (0) target = $region17
    $region16: #{tpu_custom_call.1} parent=1 // pred_region
      %42 = vsyncadd [#allocation6], 0
      %s44 = sshll.u32 %s3, 4
      %s45 = int_to_ptr.hbm [resolvable:$true] %s44
      %s46 = sshll.u32 [#allocation5], 4
      %s47 = int_to_ptr.vmem [resolvable:$true] %s46
      %49 = dma.hbm_to_vmem [thread:$0]  %s45, 32, %s47, [#allocation6]
    $region17: #{tpu_custom_call.1} parent=1 // pred_fallthru
      _
    // Predicated region
    $region18: #{tpu_custom_call.1} parent=1 // pred_check
      _
    $region19: #{tpu_custom_call.1} parent=1 // pred_check_branch
      %51 = sbr.rel (0) target = $region21
    $region20: #{tpu_custom_call.1} parent=1 // pred_region
      %53 = vsyncadd [#allocation6], 0
      %s54 = sshll.u32 %s4, 4
      %s55 = int_to_ptr.hbm [resolvable:$true] %s54
      %s56 = sshll.u32 [#allocation7], 4
      %s57 = int_to_ptr.vmem [resolvable:$true] %s56
      %62 = dma.hbm_to_vmem [thread:$0]  %s55, 8192, %s57, [#allocation6], 256, 256, 16
    $region21: #{tpu_custom_call.1} parent=1 // pred_fallthru
      _
    // Predicated region
    $region22: #{tpu_custom_call.1} parent=1 // pred_check
      _
    $region23: #{tpu_custom_call.1} parent=1 // pred_check_branch
      %64 = sbr.rel (0) target = $region25
    $region24: #{tpu_custom_call.1} parent=1 // pred_region
      _
    $region25: #{tpu_custom_call.1} parent=1 // pred_fallthru
      _
    // Predicated region
    $region26: #{tpu_custom_call.1} parent=1 // pred_check
      _
    $region27: #{tpu_custom_call.1} parent=1 // pred_check_branch
      %66 = sbr.rel (0) target = $region29
    $region28: #{tpu_custom_call.1} parent=1 // pred_region
      _
    $region29: #{tpu_custom_call.1} parent=1 // pred_fallthru
      _
    // Predicated region
    $region30: #{tpu_custom_call.1} parent=1 // pred_check
      _
    $region31: #{tpu_custom_call.1} parent=1 // pred_check_branch
      %68 = sbr.rel (0) target = $region33
    $region32: #{tpu_custom_call.1} parent=1 // pred_region
      %70 = vsyncadd [#allocation9], 0
      %s72 = sshll.u32 %s7, 4
      %s73 = int_to_ptr.hbm [resolvable:$true] %s72
      %s74 = sshll.u32 [#allocation8], 4
      %s75 = int_to_ptr.vmem [resolvable:$true] %s74
      %77 = dma.hbm_to_vmem [thread:$0]  %s73, 64, %s75, [#allocation9]
    $region33: #{tpu_custom_call.1} parent=1 // pred_fallthru
      _
    // Predicated region
    $region34: #{tpu_custom_call.1} parent=1 // pred_check
      _
    $region35: #{tpu_custom_call.1} parent=1 // pred_check_branch
      %79 = sbr.rel (0) target = $region37
    $region36: #{tpu_custom_call.1} parent=1 // pred_region
      %81 = vsyncadd [#allocation9], 0
      %s83 = sshll.u32 %s8, 4
      %s84 = int_to_ptr.hbm [resolvable:$true] %s83
      %s85 = sshll.u32 [#allocation10], 4
      %s86 = int_to_ptr.vmem [resolvable:$true] %s85
      %88 = dma.hbm_to_vmem [thread:$0]  %s84, 64, %s86, [#allocation9]
    $region37: #{tpu_custom_call.1} parent=1 // pred_fallthru
      _
    // Predicated region
    $region38: #{tpu_custom_call.1} parent=1 // pred_check
      _
    $region39: #{tpu_custom_call.1} parent=1 // pred_check_branch
      %90 = sbr.rel (0) target = $region41
    $region40: #{tpu_custom_call.1} parent=1 // pred_region
      %92 = vsyncadd [#allocation12], 0
      %s94 = sshll.u32 %s9, 4
      %s95 = int_to_ptr.hbm [resolvable:$true] %s94
      %s96 = sshll.u32 [#allocation11], 4
      %s97 = int_to_ptr.vmem [resolvable:$true] %s96
      %99 = dma.hbm_to_vmem [thread:$0]  %s95, 16, %s97, [#allocation12]
    $region41: #{tpu_custom_call.1} parent=1 // pred_fallthru
      _
    // Predicated region
    $region42: #{tpu_custom_call.1} parent=1 // pred_check
      _
    $region43: #{tpu_custom_call.1} parent=1 // pred_check_branch
      %101 = sbr.rel (0) target = $region45
    $region44: #{tpu_custom_call.1} parent=1 // pred_region
      %103 = vsyncadd [#allocation12], 0
      %s104 = sshll.u32 %s10, 4
      %s105 = int_to_ptr.hbm [resolvable:$true] %s104
      %s106 = sshll.u32 [#allocation13], 4
      %s107 = int_to_ptr.vmem [resolvable:$true] %s106
      %112 = dma.hbm_to_vmem [thread:$0]  %s105, 4096, %s107, [#allocation12], 256, 256, 16
    $region45: #{tpu_custom_call.1} parent=1 // pred_fallthru
      _
    // Predicated region
    $region46: #{tpu_custom_call.1} parent=1 // pred_check
      _
    $region47: #{tpu_custom_call.1} parent=1 // pred_check_branch
      %114 = sbr.rel (0) target = $region49
    $region48: #{tpu_custom_call.1} parent=1 // pred_region
      _
    $region49: #{tpu_custom_call.1} parent=1 // pred_fallthru
      _
    // Predicated region
    $region50: #{tpu_custom_call.1} parent=1 // pred_check
      _
    $region51: #{tpu_custom_call.1} parent=1 // pred_check_branch
      %116 = sbr.rel (0) target = $region53
    $region52: #{tpu_custom_call.1} parent=1 // pred_region
      %118 = dma.done [#allocation3], 2048
    $region53: #{tpu_custom_call.1} parent=1 // pred_fallthru
      _
    // Predicated region
    $region54: #{tpu_custom_call.1} parent=1 // pred_check
      _
    $region55: #{tpu_custom_call.1} parent=1 // pred_check_branch
      %120 = sbr.rel (0) target = $region57
    $region56: #{tpu_custom_call.1} parent=1 // pred_region
      %122 = dma.done [#allocation6], 32
    $region57: #{tpu_custom_call.1} parent=1 // pred_fallthru
      _
    // Predicated region
    $region58: #{tpu_custom_call.1} parent=1 // pred_check
      _
    $region59: #{tpu_custom_call.1} parent=1 // pred_check_branch
      %124 = sbr.rel (0) target = $region61
    $region60: #{tpu_custom_call.1} parent=1 // pred_region
      %126 = dma.done [#allocation6], 8192
    $region61: #{tpu_custom_call.1} parent=1 // pred_fallthru
      _
    // Predicated region
    $region62: #{tpu_custom_call.1} parent=1 // pred_check
      _
    $region63: #{tpu_custom_call.1} parent=1 // pred_check_branch
      %128 = sbr.rel (0) target = $region65
    $region64: #{tpu_custom_call.1} parent=1 // pred_region
      %130 = dma.done [#allocation9], 64
    $region65: #{tpu_custom_call.1} parent=1 // pred_fallthru
      _
    // Predicated region
    $region66: #{tpu_custom_call.1} parent=1 // pred_check
      _
    $region67: #{tpu_custom_call.1} parent=1 // pred_check_branch
      %132 = sbr.rel (0) target = $region69
    $region68: #{tpu_custom_call.1} parent=1 // pred_region
      %134 = dma.done [#allocation9], 64
    $region69: #{tpu_custom_call.1} parent=1 // pred_fallthru
      _
    // Predicated region
    $region70: #{tpu_custom_call.1} parent=1 // pred_check
      _
    $region71: #{tpu_custom_call.1} parent=1 // pred_check_branch
      %136 = sbr.rel (0) target = $region73
    $region72: #{tpu_custom_call.1} parent=1 // pred_region
      %138 = dma.done [#allocation12], 16
    $region73: #{tpu_custom_call.1} parent=1 // pred_fallthru
      _
    // Predicated region
    $region74: #{tpu_custom_call.1} parent=1 // pred_check
      _
    $region75: #{tpu_custom_call.1} parent=1 // pred_check_branch
      %140 = sbr.rel (0) target = $region77
    $region76: #{tpu_custom_call.1} parent=1 // pred_region
      %142 = dma.done [#allocation12], 4096
    $region77: #{tpu_custom_call.1} parent=1 // pred_fallthru
      _
    %v143 = vld [vmem:[%s0] sm:$0xff]
    %v144 = vpack.c.bf16 %v143, %v143
    %v145 = vld [vmem:[#allocation2] sm:$0xff]
    %v146 = vld [vmem:[#allocation2 + $0x8] sm:$0xff]
    %v147 = vld [vmem:[#allocation2 + $0x10] sm:$0xff]
    %v148 = vld [vmem:[#allocation2 + $0x18] sm:$0xff]
    %v149 = vld [vmem:[#allocation2 + $0x20] sm:$0xff]
    %v150 = vld [vmem:[#allocation2 + $0x28] sm:$0xff]
    %v151 = vld [vmem:[#allocation2 + $0x30] sm:$0xff]
    %v152 = vld [vmem:[#allocation2 + $0x38] sm:$0xff]
    %v153 = vld [vmem:[#allocation2 + $0x40] sm:$0xff]
    %v154 = vld [vmem:[#allocation2 + $0x48] sm:$0xff]
    %v155 = vld [vmem:[#allocation2 + $0x50] sm:$0xff]
    %v156 = vld [vmem:[#allocation2 + $0x58] sm:$0xff]
    %v157 = vld [vmem:[#allocation2 + $0x60] sm:$0xff]
    %v158 = vld [vmem:[#allocation2 + $0x68] sm:$0xff]
    %v159 = vld [vmem:[#allocation2 + $0x70] sm:$0xff]
    %v160 = vld [vmem:[#allocation2 + $0x78] sm:$0xff]
    %v161 = vld [vmem:[#allocation5] sm:$0x3]
    %v163 = vperm.slane %v161, 0
    %v164 = vperm.slane %v161, 1
    %v183 = vunpack.c.l.b16 %v145
    %v184 = vunpack.c.h.b16 %v145
    %v185 = vunpack.c.l.b16 %v146
    %v186 = vunpack.c.h.b16 %v146
    %v187 = vunpack.c.l.b16 %v147
    %v188 = vunpack.c.h.b16 %v147
    %v189 = vunpack.c.l.b16 %v148
    %v190 = vunpack.c.h.b16 %v148
    %v191 = vunpack.c.l.b16 %v149
    %v192 = vunpack.c.h.b16 %v149
    %v193 = vunpack.c.l.b16 %v150
    %v194 = vunpack.c.h.b16 %v150
    %v195 = vunpack.c.l.b16 %v151
    %v196 = vunpack.c.h.b16 %v151
    %v197 = vunpack.c.l.b16 %v152
    %v198 = vunpack.c.h.b16 %v152
    %v199 = vunpack.c.l.b16 %v153
    %v200 = vunpack.c.h.b16 %v153
    %v201 = vunpack.c.l.b16 %v154
    %v202 = vunpack.c.h.b16 %v154
    %v203 = vunpack.c.l.b16 %v155
    %v204 = vunpack.c.h.b16 %v155
    %v205 = vunpack.c.l.b16 %v156
    %v206 = vunpack.c.h.b16 %v156
    %v207 = vunpack.c.l.b16 %v157
    %v208 = vunpack.c.h.b16 %v157
    %v209 = vunpack.c.l.b16 %v158
    %v210 = vunpack.c.h.b16 %v158
    %v211 = vunpack.c.l.b16 %v159
    %v212 = vunpack.c.h.b16 %v159
    %v213 = vunpack.c.l.b16 %v160
    %v214 = vunpack.c.h.b16 %v160
    %v215 = vpack.c.b16 %v185, %v183
    %v216 = vpack.c.b16 %v186, %v184
    %v217 = vpack.c.b16 %v189, %v187
    %v218 = vpack.c.b16 %v190, %v188
    %v219 = vpack.c.b16 %v193, %v191
    %v220 = vpack.c.b16 %v194, %v192
    %v221 = vpack.c.b16 %v197, %v195
    %v222 = vpack.c.b16 %v198, %v196
    %v223 = vpack.c.b16 %v201, %v199
    %v224 = vpack.c.b16 %v202, %v200
    %v225 = vpack.c.b16 %v205, %v203
    %v226 = vpack.c.b16 %v206, %v204
    %v227 = vpack.c.b16 %v209, %v207
    %v228 = vpack.c.b16 %v210, %v208
    %v229 = vpack.c.b16 %v213, %v211
    %v230 = vpack.c.b16 %v214, %v212
    %247 = vmatpush.bf16.msra.mxu0 %v229
    %248 = vmatpush.bf16.msra.mxu0 %v227
    %249 = vmatpush.bf16.msra.mxu0 %v225
    %250 = vmatpush.bf16.msra.mxu0 %v223
    %251 = vmatpush.bf16.msra.mxu0 %v221
    %252 = vmatpush.bf16.msra.mxu0 %v219
    %253 = vmatpush.bf16.msra.mxu0 %v217
    %254 = vmatpush.bf16.msra.mxu0 %v215
    %255 = vmatmul.bf16.gmra.mxu0 %v144
    %v256 = vpop.f32.mrf.mxu0
    %v257 = vadd.f32 %v163, %v256
    %v258 = vpop.f32.mrf.mxu0
    %259 = vdwg.mxu0
    %260 = vmatpush.bf16.msra.mxu0 %v230
    %261 = vmatpush.bf16.msra.mxu0 %v228
    %262 = vmatpush.bf16.msra.mxu0 %v226
    %263 = vmatpush.bf16.msra.mxu0 %v224
    %264 = vmatpush.bf16.msra.mxu0 %v222
    %265 = vmatpush.bf16.msra.mxu0 %v220
    %266 = vmatpush.bf16.msra.mxu0 %v218
    %267 = vmatpush.bf16.msra.mxu0 %v216
    %268 = vmatmul.bf16.gmra.mxu0 %v144
    %v269 = vpop.f32.mrf.mxu0
    %v270 = vadd.f32 %v164, %v269
    %v271 = vpop.f32.mrf.mxu0
    %272 = vdwg.mxu0
    %v273 = vmax.f32 %v257, 0.0
    %v274 = vmax.f32 %v270, 0.0
    %v275 = vpack.c.bf16 %v273, %v273
    %v276 = vpack.c.bf16 %v274, %v274
    %v277 = vld [vmem:[#allocation7] sm:$0xff]
    %v278 = vld [vmem:[#allocation7 + $0x8] sm:$0xff]
    %v279 = vld [vmem:[#allocation7 + $0x10] sm:$0xff]
    %v280 = vld [vmem:[#allocation7 + $0x18] sm:$0xff]
    %v281 = vld [vmem:[#allocation7 + $0x20] sm:$0xff]
    %v282 = vld [vmem:[#allocation7 + $0x28] sm:$0xff]
    %v283 = vld [vmem:[#allocation7 + $0x30] sm:$0xff]
    %v284 = vld [vmem:[#allocation7 + $0x38] sm:$0xff]
    %v285 = vld [vmem:[#allocation7 + $0x40] sm:$0xff]
    %v286 = vld [vmem:[#allocation7 + $0x48] sm:$0xff]
    %v287 = vld [vmem:[#allocation7 + $0x50] sm:$0xff]
    %v288 = vld [vmem:[#allocation7 + $0x58] sm:$0xff]
    %v289 = vld [vmem:[#allocation7 + $0x60] sm:$0xff]
    %v290 = vld [vmem:[#allocation7 + $0x68] sm:$0xff]
    %v291 = vld [vmem:[#allocation7 + $0x70] sm:$0xff]
    %v292 = vld [vmem:[#allocation7 + $0x78] sm:$0xff]
    %v293 = vld [vmem:[#allocation7 + $0x80] sm:$0xff]
    %v294 = vld [vmem:[#allocation7 + $0x88] sm:$0xff]
    %v295 = vld [vmem:[#allocation7 + $0x90] sm:$0xff]
    %v296 = vld [vmem:[#allocation7 + $0x98] sm:$0xff]
    %v297 = vld [vmem:[#allocation7 + $0xa0] sm:$0xff]
    %v298 = vld [vmem:[#allocation7 + $0xa8] sm:$0xff]
    %v299 = vld [vmem:[#allocation7 + $0xb0] sm:$0xff]
    %v300 = vld [vmem:[#allocation7 + $0xb8] sm:$0xff]
    %v301 = vld [vmem:[#allocation7 + $0xc0] sm:$0xff]
    %v302 = vld [vmem:[#allocation7 + $0xc8] sm:$0xff]
    %v303 = vld [vmem:[#allocation7 + $0xd0] sm:$0xff]
    %v304 = vld [vmem:[#allocation7 + $0xd8] sm:$0xff]
    %v305 = vld [vmem:[#allocation7 + $0xe0] sm:$0xff]
    %v306 = vld [vmem:[#allocation7 + $0xe8] sm:$0xff]
    %v307 = vld [vmem:[#allocation7 + $0xf0] sm:$0xff]
    %v308 = vld [vmem:[#allocation7 + $0xf8] sm:$0xff]
    %v309 = vld [vmem:[#allocation7 + $0x100] sm:$0xff]
    %v310 = vld [vmem:[#allocation7 + $0x108] sm:$0xff]
    %v311 = vld [vmem:[#allocation7 + $0x110] sm:$0xff]
    %v312 = vld [vmem:[#allocation7 + $0x118] sm:$0xff]
    %v313 = vld [vmem:[#allocation7 + $0x120] sm:$0xff]
    %v314 = vld [vmem:[#allocation7 + $0x128] sm:$0xff]
    %v315 = vld [vmem:[#allocation7 + $0x130] sm:$0xff]
    %v316 = vld [vmem:[#allocation7 + $0x138] sm:$0xff]
    %v317 = vld [vmem:[#allocation7 + $0x140] sm:$0xff]
    %v318 = vld [vmem:[#allocation7 + $0x148] sm:$0xff]
    %v319 = vld [vmem:[#allocation7 + $0x150] sm:$0xff]
    %v320 = vld [vmem:[#allocation7 + $0x158] sm:$0xff]
    %v321 = vld [vmem:[#allocation7 + $0x160] sm:$0xff]
    %v322 = vld [vmem:[#allocation7 + $0x168] sm:$0xff]
    %v323 = vld [vmem:[#allocation7 + $0x170] sm:$0xff]
    %v324 = vld [vmem:[#allocation7 + $0x178] sm:$0xff]
    %v325 = vld [vmem:[#allocation7 + $0x180] sm:$0xff]
    %v326 = vld [vmem:[#allocation7 + $0x188] sm:$0xff]
    %v327 = vld [vmem:[#allocation7 + $0x190] sm:$0xff]
    %v328 = vld [vmem:[#allocation7 + $0x198] sm:$0xff]
    %v329 = vld [vmem:[#allocation7 + $0x1a0] sm:$0xff]
    %v330 = vld [vmem:[#allocation7 + $0x1a8] sm:$0xff]
    %v331 = vld [vmem:[#allocation7 + $0x1b0] sm:$0xff]
    %v332 = vld [vmem:[#allocation7 + $0x1b8] sm:$0xff]
    %v333 = vld [vmem:[#allocation7 + $0x1c0] sm:$0xff]
    %v334 = vld [vmem:[#allocation7 + $0x1c8] sm:$0xff]
    %v335 = vld [vmem:[#allocation7 + $0x1d0] sm:$0xff]
    %v336 = vld [vmem:[#allocation7 + $0x1d8] sm:$0xff]
    %v337 = vld [vmem:[#allocation7 + $0x1e0] sm:$0xff]
    %v338 = vld [vmem:[#allocation7 + $0x1e8] sm:$0xff]
    %v339 = vld [vmem:[#allocation7 + $0x1f0] sm:$0xff]
    %v340 = vld [vmem:[#allocation7 + $0x1f8] sm:$0xff]
    %v341 = vld [vmem:[%s5] sm:$0xf]
    %v343 = vperm.slane %v341, 0
    %v344 = vperm.slane %v341, 1
    %v345 = vperm.slane %v341, 2
    %v346 = vperm.slane %v341, 3
    %v415 = vunpack.c.l.b16 %v277
    %v416 = vunpack.c.h.b16 %v277
    %v417 = vunpack.c.l.b16 %v278
    %v418 = vunpack.c.h.b16 %v278
    %v419 = vunpack.c.l.b16 %v279
    %v420 = vunpack.c.h.b16 %v279
    %v421 = vunpack.c.l.b16 %v280
    %v422 = vunpack.c.h.b16 %v280
    %v423 = vunpack.c.l.b16 %v281
    %v424 = vunpack.c.h.b16 %v281
    %v425 = vunpack.c.l.b16 %v282
    %v426 = vunpack.c.h.b16 %v282
    %v427 = vunpack.c.l.b16 %v283
    %v428 = vunpack.c.h.b16 %v283
    %v429 = vunpack.c.l.b16 %v284
    %v430 = vunpack.c.h.b16 %v284
    %v431 = vunpack.c.l.b16 %v285
    %v432 = vunpack.c.h.b16 %v285
    %v433 = vunpack.c.l.b16 %v286
    %v434 = vunpack.c.h.b16 %v286
    %v435 = vunpack.c.l.b16 %v287
    %v436 = vunpack.c.h.b16 %v287
    %v437 = vunpack.c.l.b16 %v288
    %v438 = vunpack.c.h.b16 %v288
    %v439 = vunpack.c.l.b16 %v289
    %v440 = vunpack.c.h.b16 %v289
    %v441 = vunpack.c.l.b16 %v290
    %v442 = vunpack.c.h.b16 %v290
    %v443 = vunpack.c.l.b16 %v291
    %v444 = vunpack.c.h.b16 %v291
    %v445 = vunpack.c.l.b16 %v292
    %v446 = vunpack.c.h.b16 %v292
    %v447 = vunpack.c.l.b16 %v293
    %v448 = vunpack.c.h.b16 %v293
    %v449 = vunpack.c.l.b16 %v294
    %v450 = vunpack.c.h.b16 %v294
    %v451 = vunpack.c.l.b16 %v295
    %v452 = vunpack.c.h.b16 %v295
    %v453 = vunpack.c.l.b16 %v296
    %v454 = vunpack.c.h.b16 %v296
    %v455 = vunpack.c.l.b16 %v297
    %v456 = vunpack.c.h.b16 %v297
    %v457 = vunpack.c.l.b16 %v298
    %v458 = vunpack.c.h.b16 %v298
    %v459 = vunpack.c.l.b16 %v299
    %v460 = vunpack.c.h.b16 %v299
    %v461 = vunpack.c.l.b16 %v300
    %v462 = vunpack.c.h.b16 %v300
    %v463 = vunpack.c.l.b16 %v301
    %v464 = vunpack.c.h.b16 %v301
    %v465 = vunpack.c.l.b16 %v302
    %v466 = vunpack.c.h.b16 %v302
    %v467 = vunpack.c.l.b16 %v303
    %v468 = vunpack.c.h.b16 %v303
    %v469 = vunpack.c.l.b16 %v304
    %v470 = vunpack.c.h.b16 %v304
    %v471 = vunpack.c.l.b16 %v305
    %v472 = vunpack.c.h.b16 %v305
    %v473 = vunpack.c.l.b16 %v306
    %v474 = vunpack.c.h.b16 %v306
    %v475 = vunpack.c.l.b16 %v307
    %v476 = vunpack.c.h.b16 %v307
    %v477 = vunpack.c.l.b16 %v308
    %v478 = vunpack.c.h.b16 %v308
    %v479 = vunpack.c.l.b16 %v309
    %v480 = vunpack.c.h.b16 %v309
    %v481 = vunpack.c.l.b16 %v310
    %v482 = vunpack.c.h.b16 %v310
    %v483 = vunpack.c.l.b16 %v311
    %v484 = vunpack.c.h.b16 %v311
    %v485 = vunpack.c.l.b16 %v312
    %v486 = vunpack.c.h.b16 %v312
    %v487 = vunpack.c.l.b16 %v313
    %v488 = vunpack.c.h.b16 %v313
    %v489 = vunpack.c.l.b16 %v314
    %v490 = vunpack.c.h.b16 %v314
    %v491 = vunpack.c.l.b16 %v315
    %v492 = vunpack.c.h.b16 %v315
    %v493 = vunpack.c.l.b16 %v316
    %v494 = vunpack.c.h.b16 %v316
    %v495 = vunpack.c.l.b16 %v317
    %v496 = vunpack.c.h.b16 %v317
    %v497 = vunpack.c.l.b16 %v318
    %v498 = vunpack.c.h.b16 %v318
    %v499 = vunpack.c.l.b16 %v319
    %v500 = vunpack.c.h.b16 %v319
    %v501 = vunpack.c.l.b16 %v320
    %v502 = vunpack.c.h.b16 %v320
    %v503 = vunpack.c.l.b16 %v321
    %v504 = vunpack.c.h.b16 %v321
    %v505 = vunpack.c.l.b16 %v322
    %v506 = vunpack.c.h.b16 %v322
    %v507 = vunpack.c.l.b16 %v323
    %v508 = vunpack.c.h.b16 %v323
    %v509 = vunpack.c.l.b16 %v324
    %v510 = vunpack.c.h.b16 %v324
    %v511 = vunpack.c.l.b16 %v325
    %v512 = vunpack.c.h.b16 %v325
    %v513 = vunpack.c.l.b16 %v326
    %v514 = vunpack.c.h.b16 %v326
    %v515 = vunpack.c.l.b16 %v327
    %v516 = vunpack.c.h.b16 %v327
    %v517 = vunpack.c.l.b16 %v328
    %v518 = vunpack.c.h.b16 %v328
    %v519 = vunpack.c.l.b16 %v329
    %v520 = vunpack.c.h.b16 %v329
    %v521 = vunpack.c.l.b16 %v330
    %v522 = vunpack.c.h.b16 %v330
    %v523 = vunpack.c.l.b16 %v331
    %v524 = vunpack.c.h.b16 %v331
    %v525 = vunpack.c.l.b16 %v332
    %v526 = vunpack.c.h.b16 %v332
    %v527 = vunpack.c.l.b16 %v333
    %v528 = vunpack.c.h.b16 %v333
    %v529 = vunpack.c.l.b16 %v334
    %v530 = vunpack.c.h.b16 %v334
    %v531 = vunpack.c.l.b16 %v335
    %v532 = vunpack.c.h.b16 %v335
    %v533 = vunpack.c.l.b16 %v336
    %v534 = vunpack.c.h.b16 %v336
    %v535 = vunpack.c.l.b16 %v337
    %v536 = vunpack.c.h.b16 %v337
    %v537 = vunpack.c.l.b16 %v338
    %v538 = vunpack.c.h.b16 %v338
    %v539 = vunpack.c.l.b16 %v339
    %v540 = vunpack.c.h.b16 %v339
    %v541 = vunpack.c.l.b16 %v340
    %v542 = vunpack.c.h.b16 %v340
    %v543 = vpack.c.b16 %v419, %v415
    %v544 = vpack.c.b16 %v420, %v416
    %v545 = vpack.c.b16 %v421, %v417
    %v546 = vpack.c.b16 %v422, %v418
    %v547 = vpack.c.b16 %v427, %v423
    %v548 = vpack.c.b16 %v428, %v424
    %v549 = vpack.c.b16 %v429, %v425
    %v550 = vpack.c.b16 %v430, %v426
    %v551 = vpack.c.b16 %v435, %v431
    %v552 = vpack.c.b16 %v436, %v432
    %v553 = vpack.c.b16 %v437, %v433
    %v554 = vpack.c.b16 %v438, %v434
    %v555 = vpack.c.b16 %v443, %v439
    %v556 = vpack.c.b16 %v444, %v440
    %v557 = vpack.c.b16 %v445, %v441
    %v558 = vpack.c.b16 %v446, %v442
    %v559 = vpack.c.b16 %v451, %v447
    %v560 = vpack.c.b16 %v452, %v448
    %v561 = vpack.c.b16 %v453, %v449
    %v562 = vpack.c.b16 %v454, %v450
    %v563 = vpack.c.b16 %v459, %v455
    %v564 = vpack.c.b16 %v460, %v456
    %v565 = vpack.c.b16 %v461, %v457
    %v566 = vpack.c.b16 %v462, %v458
    %v567 = vpack.c.b16 %v467, %v463
    %v568 = vpack.c.b16 %v468, %v464
    %v569 = vpack.c.b16 %v469, %v465
    %v570 = vpack.c.b16 %v470, %v466
    %v571 = vpack.c.b16 %v475, %v471
    %v572 = vpack.c.b16 %v476, %v472
    %v573 = vpack.c.b16 %v477, %v473
    %v574 = vpack.c.b16 %v478, %v474
    %v575 = vpack.c.b16 %v483, %v479
    %v576 = vpack.c.b16 %v484, %v480
    %v577 = vpack.c.b16 %v485, %v481
    %v578 = vpack.c.b16 %v486, %v482
    %v579 = vpack.c.b16 %v491, %v487
    %v580 = vpack.c.b16 %v492, %v488
    %v581 = vpack.c.b16 %v493, %v489
    %v582 = vpack.c.b16 %v494, %v490
    %v583 = vpack.c.b16 %v499, %v495
    %v584 = vpack.c.b16 %v500, %v496
    %v585 = vpack.c.b16 %v501, %v497
    %v586 = vpack.c.b16 %v502, %v498
    %v587 = vpack.c.b16 %v507, %v503
    %v588 = vpack.c.b16 %v508, %v504
    %v589 = vpack.c.b16 %v509, %v505
    %v590 = vpack.c.b16 %v510, %v506
    %v591 = vpack.c.b16 %v515, %v511
    %v592 = vpack.c.b16 %v516, %v512
    %v593 = vpack.c.b16 %v517, %v513
    %v594 = vpack.c.b16 %v518, %v514
    %v595 = vpack.c.b16 %v523, %v519
    %v596 = vpack.c.b16 %v524, %v520
    %v597 = vpack.c.b16 %v525, %v521
    %v598 = vpack.c.b16 %v526, %v522
    %v599 = vpack.c.b16 %v531, %v527
    %v600 = vpack.c.b16 %v532, %v528
    %v601 = vpack.c.b16 %v533, %v529
    %v602 = vpack.c.b16 %v534, %v530
    %v603 = vpack.c.b16 %v539, %v535
    %v604 = vpack.c.b16 %v540, %v536
    %v605 = vpack.c.b16 %v541, %v537
    %v606 = vpack.c.b16 %v542, %v538
    %671 = vmatpush.bf16.msra.mxu0 %v571
    %672 = vmatpush.bf16.msra.mxu0 %v567
    %673 = vmatpush.bf16.msra.mxu0 %v563
    %674 = vmatpush.bf16.msra.mxu0 %v559
    %675 = vmatpush.bf16.msra.mxu0 %v555
    %676 = vmatpush.bf16.msra.mxu0 %v551
    %677 = vmatpush.bf16.msra.mxu0 %v547
    %678 = vmatpush.bf16.msra.mxu0 %v543
    %679 = vmatmul.bf16.gmra.mxu0 %v275
    %v680 = vpop.f32.mrf.mxu0
    %v681 = vadd.f32 %v343, %v680
    %v682 = vpop.f32.mrf.mxu0
    %683 = vdwg.mxu0
    %684 = vmatpush.bf16.msra.mxu0 %v603
    %685 = vmatpush.bf16.msra.mxu0 %v599
    %686 = vmatpush.bf16.msra.mxu0 %v595
    %687 = vmatpush.bf16.msra.mxu0 %v591
    %688 = vmatpush.bf16.msra.mxu0 %v587
    %689 = vmatpush.bf16.msra.mxu0 %v583
    %690 = vmatpush.bf16.msra.mxu0 %v579
    %691 = vmatpush.bf16.msra.mxu0 %v575
    %692 = vmatmul.bf16.gmra.mxu0 %v276
    %v693 = vpop.f32.mrf.mxu0
    %v694 = vadd.f32 %v681, %v693
    %v695 = vpop.f32.mrf.mxu0
    %696 = vdwg.mxu0
    %697 = vmatpush.bf16.msra.mxu0 %v572
    %698 = vmatpush.bf16.msra.mxu0 %v568
    %699 = vmatpush.bf16.msra.mxu0 %v564
    %700 = vmatpush.bf16.msra.mxu0 %v560
    %701 = vmatpush.bf16.msra.mxu0 %v556
    %702 = vmatpush.bf16.msra.mxu0 %v552
    %703 = vmatpush.bf16.msra.mxu0 %v548
    %704 = vmatpush.bf16.msra.mxu0 %v544
    %705 = vmatmul.bf16.gmra.mxu0 %v275
    %v706 = vpop.f32.mrf.mxu0
    %v707 = vadd.f32 %v344, %v706
    %v708 = vpop.f32.mrf.mxu0
    %709 = vdwg.mxu0
    %710 = vmatpush.bf16.msra.mxu0 %v604
    %711 = vmatpush.bf16.msra.mxu0 %v600
    %712 = vmatpush.bf16.msra.mxu0 %v596
    %713 = vmatpush.bf16.msra.mxu0 %v592
    %714 = vmatpush.bf16.msra.mxu0 %v588
    %715 = vmatpush.bf16.msra.mxu0 %v584
    %716 = vmatpush.bf16.msra.mxu0 %v580
    %717 = vmatpush.bf16.msra.mxu0 %v576
    %718 = vmatmul.bf16.gmra.mxu0 %v276
    %v719 = vpop.f32.mrf.mxu0
    %v720 = vadd.f32 %v707, %v719
    %v721 = vpop.f32.mrf.mxu0
    %722 = vdwg.mxu0
    %723 = vmatpush.bf16.msra.mxu0 %v573
    %724 = vmatpush.bf16.msra.mxu0 %v569
    %725 = vmatpush.bf16.msra.mxu0 %v565
    %726 = vmatpush.bf16.msra.mxu0 %v561
    %727 = vmatpush.bf16.msra.mxu0 %v557
    %728 = vmatpush.bf16.msra.mxu0 %v553
    %729 = vmatpush.bf16.msra.mxu0 %v549
    %730 = vmatpush.bf16.msra.mxu0 %v545
    %731 = vmatmul.bf16.gmra.mxu0 %v275
    %v732 = vpop.f32.mrf.mxu0
    %v733 = vadd.f32 %v345, %v732
    %v734 = vpop.f32.mrf.mxu0
    %735 = vdwg.mxu0
    %736 = vmatpush.bf16.msra.mxu0 %v605
    %737 = vmatpush.bf16.msra.mxu0 %v601
    %738 = vmatpush.bf16.msra.mxu0 %v597
    %739 = vmatpush.bf16.msra.mxu0 %v593
    %740 = vmatpush.bf16.msra.mxu0 %v589
    %741 = vmatpush.bf16.msra.mxu0 %v585
    %742 = vmatpush.bf16.msra.mxu0 %v581
    %743 = vmatpush.bf16.msra.mxu0 %v577
    %744 = vmatmul.bf16.gmra.mxu0 %v276
    %v745 = vpop.f32.mrf.mxu0
    %v746 = vadd.f32 %v733, %v745
    %v747 = vpop.f32.mrf.mxu0
    %748 = vdwg.mxu0
    %749 = vmatpush.bf16.msra.mxu0 %v574
    %750 = vmatpush.bf16.msra.mxu0 %v570
    %751 = vmatpush.bf16.msra.mxu0 %v566
    %752 = vmatpush.bf16.msra.mxu0 %v562
    %753 = vmatpush.bf16.msra.mxu0 %v558
    %754 = vmatpush.bf16.msra.mxu0 %v554
    %755 = vmatpush.bf16.msra.mxu0 %v550
    %756 = vmatpush.bf16.msra.mxu0 %v546
    %757 = vmatmul.bf16.gmra.mxu0 %v275
    %v758 = vpop.f32.mrf.mxu0
    %v759 = vadd.f32 %v346, %v758
    %v760 = vpop.f32.mrf.mxu0
    %761 = vdwg.mxu0
    %762 = vmatpush.bf16.msra.mxu0 %v606
    %763 = vmatpush.bf16.msra.mxu0 %v602
    %764 = vmatpush.bf16.msra.mxu0 %v598
    %765 = vmatpush.bf16.msra.mxu0 %v594
    %766 = vmatpush.bf16.msra.mxu0 %v590
    %767 = vmatpush.bf16.msra.mxu0 %v586
    %768 = vmatpush.bf16.msra.mxu0 %v582
    %769 = vmatpush.bf16.msra.mxu0 %v578
    %770 = vmatmul.bf16.gmra.mxu0 %v276
    %v771 = vpop.f32.mrf.mxu0
    %v772 = vadd.f32 %v759, %v771
    %v773 = vpop.f32.mrf.mxu0
    %774 = vdwg.mxu0
    %v775 = vadd.f32 %v694, %v720
    %v776 = vadd.f32 %v775, %v746
    %v777 = vadd.f32 %v776, %v772
    %778 = vadd.xlane.f32.xlu0 %v777
    %v779 = vpop.xlane.xlu0 %778
    %v780 = vmul.f32 %v779, 0.001953125
    %v781 = vmul.f32 %v694, %v694
    %v782 = vmul.f32 %v720, %v720
    %v783 = vmul.f32 %v746, %v746
    %v784 = vmul.f32 %v772, %v772
    %v785 = vadd.f32 %v781, %v782
    %v786 = vadd.f32 %v785, %v783
    %v787 = vadd.f32 %v786, %v784
    %788 = vadd.xlane.f32.xlu0 %v787
    %v789 = vpop.xlane.xlu0 %788
    %v790 = vmul.f32 %v789, 0.001953125
    %v791 = vmul.f32 %v780, %v780
    %v792 = vsub.f32 %v790, %v791
    %v793 = vmax.f32 %v792, 0.0
    %v794 = vsub.f32 %v694, %v780
    %v795 = vsub.f32 %v720, %v780
    %v796 = vsub.f32 %v746, %v780
    %v797 = vsub.f32 %v772, %v780
    %v798 = vadd.f32 %v793, 1e-05
    %v799 = vrsqrt.pop %v798
    %v800 = vmul.f32 %v799, %v798
    %v801 = vmul.f32 %v800, %v799
    %v802 = vmul.f32 0.5, %v801
    %v803 = vsub.f32 1.5, %v802
    %v804 = vmul.f32 %v799, %v803
    %vm805 = vweird.f32 %v798
    %vm806 = vweird.f32 %v799
    %vm807 = vmor %vm805, %vm806
    %v808 = vsel %vm807, %v799, %v804
    %v809 = vmul.f32 %v794, %v808
    %v810 = vmul.f32 %v795, %v808
    %v811 = vmul.f32 %v796, %v808
    %v812 = vmul.f32 %v797, %v808
    %v813 = vld [vmem:[%s6] sm:$0xf]
    %v815 = vperm.slane %v813, 0
    %v816 = vperm.slane %v813, 1
    %v817 = vperm.slane %v813, 2
    %v818 = vperm.slane %v813, 3
    %v823 = vmul.f32 %v809, %v815
    %v824 = vmul.f32 %v810, %v816
    %v825 = vmul.f32 %v811, %v817
    %v826 = vmul.f32 %v812, %v818
    %v827 = vld [vmem:[#allocation8] sm:$0xf]
    %v829 = vperm.slane %v827, 0
    %v830 = vperm.slane %v827, 1
    %v831 = vperm.slane %v827, 2
    %v832 = vperm.slane %v827, 3
    %v837 = vadd.f32 %v823, %v829
    %v838 = vadd.f32 %v824, %v830
    %v839 = vadd.f32 %v825, %v831
    %v840 = vadd.f32 %v826, %v832
    %v841 = vld [vmem:[%s1] sm:$0xff]
    %v842 = vld [vmem:[#allocation10] sm:$0xf]
    %844 = vset.pattern.permute.xlu0 0
    %845 = vperm.xlu0 %844, %v841
    %v846 = vpop.permute.xlu0 %845
    %v848 = vperm.slane %v842, 0
    %v849 = vmul.f32 %v846, %v848
    %850 = vset.pattern.permute.xlu0 1
    %851 = vperm.xlu0 %850, %v841
    %v852 = vpop.permute.xlu0 %851
    %v854 = vperm.slane %v842, 1
    %v855 = vmul.f32 %v852, %v854
    %v856 = vadd.f32 %v849, %v855
    %857 = vset.pattern.permute.xlu0 2
    %858 = vperm.xlu0 %857, %v841
    %v859 = vpop.permute.xlu0 %858
    %v861 = vperm.slane %v842, 2
    %v862 = vmul.f32 %v859, %v861
    %v863 = vadd.f32 %v856, %v862
    %864 = vset.pattern.permute.xlu0 3
    %865 = vperm.xlu0 %864, %v841
    %v866 = vpop.permute.xlu0 %865
    %v868 = vperm.slane %v842, 3
    %v869 = vmul.f32 %v866, %v868
    %v870 = vadd.f32 %v863, %v869
    %v871 = vld [vmem:[#allocation11] sm:$0x1]
    %v873 = vperm.slane %v871, 0
    %v875 = vadd.f32 %v870, %v873
    %v876 = vmax.f32 %v875, 0.0
    %v877 = vpack.c.bf16 %v876, %v876
    %v878 = vld [vmem:[#allocation13] sm:$0xff]
    %v879 = vld [vmem:[#allocation13 + $0x8] sm:$0xff]
    %v880 = vld [vmem:[#allocation13 + $0x10] sm:$0xff]
    %v881 = vld [vmem:[#allocation13 + $0x18] sm:$0xff]
    %v882 = vld [vmem:[#allocation13 + $0x20] sm:$0xff]
    %v883 = vld [vmem:[#allocation13 + $0x28] sm:$0xff]
    %v884 = vld [vmem:[#allocation13 + $0x30] sm:$0xff]
    %v885 = vld [vmem:[#allocation13 + $0x38] sm:$0xff]
    %v886 = vld [vmem:[#allocation13 + $0x40] sm:$0xff]
    %v887 = vld [vmem:[#allocation13 + $0x48] sm:$0xff]
    %v888 = vld [vmem:[#allocation13 + $0x50] sm:$0xff]
    %v889 = vld [vmem:[#allocation13 + $0x58] sm:$0xff]
    %v890 = vld [vmem:[#allocation13 + $0x60] sm:$0xff]
    %v891 = vld [vmem:[#allocation13 + $0x68] sm:$0xff]
    %v892 = vld [vmem:[#allocation13 + $0x70] sm:$0xff]
    %v893 = vld [vmem:[#allocation13 + $0x78] sm:$0xff]
    %v894 = vld [vmem:[#allocation13 + $0x80] sm:$0xff]
    %v895 = vld [vmem:[#allocation13 + $0x88] sm:$0xff]
    %v896 = vld [vmem:[#allocation13 + $0x90] sm:$0xff]
    %v897 = vld [vmem:[#allocation13 + $0x98] sm:$0xff]
    %v898 = vld [vmem:[#allocation13 + $0xa0] sm:$0xff]
    %v899 = vld [vmem:[#allocation13 + $0xa8] sm:$0xff]
    %v900 = vld [vmem:[#allocation13 + $0xb0] sm:$0xff]
    %v901 = vld [vmem:[#allocation13 + $0xb8] sm:$0xff]
    %v902 = vld [vmem:[#allocation13 + $0xc0] sm:$0xff]
    %v903 = vld [vmem:[#allocation13 + $0xc8] sm:$0xff]
    %v904 = vld [vmem:[#allocation13 + $0xd0] sm:$0xff]
    %v905 = vld [vmem:[#allocation13 + $0xd8] sm:$0xff]
    %v906 = vld [vmem:[#allocation13 + $0xe0] sm:$0xff]
    %v907 = vld [vmem:[#allocation13 + $0xe8] sm:$0xff]
    %v908 = vld [vmem:[#allocation13 + $0xf0] sm:$0xff]
    %v909 = vld [vmem:[#allocation13 + $0xf8] sm:$0xff]
    %v910 = vld [vmem:[%s11] sm:$0xf]
    %v912 = vperm.slane %v910, 0
    %v913 = vperm.slane %v910, 1
    %v914 = vperm.slane %v910, 2
    %v915 = vperm.slane %v910, 3
    %v952 = vunpack.c.l.b16 %v878
    %v953 = vunpack.c.h.b16 %v878
    %v954 = vunpack.c.l.b16 %v879
    %v955 = vunpack.c.h.b16 %v879
    %v956 = vunpack.c.l.b16 %v880
    %v957 = vunpack.c.h.b16 %v880
    %v958 = vunpack.c.l.b16 %v881
    %v959 = vunpack.c.h.b16 %v881
    %v960 = vunpack.c.l.b16 %v882
    %v961 = vunpack.c.h.b16 %v882
    %v962 = vunpack.c.l.b16 %v883
    %v963 = vunpack.c.h.b16 %v883
    %v964 = vunpack.c.l.b16 %v884
    %v965 = vunpack.c.h.b16 %v884
    %v966 = vunpack.c.l.b16 %v885
    %v967 = vunpack.c.h.b16 %v885
    %v968 = vunpack.c.l.b16 %v886
    %v969 = vunpack.c.h.b16 %v886
    %v970 = vunpack.c.l.b16 %v887
    %v971 = vunpack.c.h.b16 %v887
    %v972 = vunpack.c.l.b16 %v888
    %v973 = vunpack.c.h.b16 %v888
    %v974 = vunpack.c.l.b16 %v889
    %v975 = vunpack.c.h.b16 %v889
    %v976 = vunpack.c.l.b16 %v890
    %v977 = vunpack.c.h.b16 %v890
    %v978 = vunpack.c.l.b16 %v891
    %v979 = vunpack.c.h.b16 %v891
    %v980 = vunpack.c.l.b16 %v892
    %v981 = vunpack.c.h.b16 %v892
    %v982 = vunpack.c.l.b16 %v893
    %v983 = vunpack.c.h.b16 %v893
    %v984 = vunpack.c.l.b16 %v894
    %v985 = vunpack.c.h.b16 %v894
    %v986 = vunpack.c.l.b16 %v895
    %v987 = vunpack.c.h.b16 %v895
    %v988 = vunpack.c.l.b16 %v896
    %v989 = vunpack.c.h.b16 %v896
    %v990 = vunpack.c.l.b16 %v897
    %v991 = vunpack.c.h.b16 %v897
    %v992 = vunpack.c.l.b16 %v898
    %v993 = vunpack.c.h.b16 %v898
    %v994 = vunpack.c.l.b16 %v899
    %v995 = vunpack.c.h.b16 %v899
    %v996 = vunpack.c.l.b16 %v900
    %v997 = vunpack.c.h.b16 %v900
    %v998 = vunpack.c.l.b16 %v901
    %v999 = vunpack.c.h.b16 %v901
    %v1000 = vunpack.c.l.b16 %v902
    %v1001 = vunpack.c.h.b16 %v902
    %v1002 = vunpack.c.l.b16 %v903
    %v1003 = vunpack.c.h.b16 %v903
    %v1004 = vunpack.c.l.b16 %v904
    %v1005 = vunpack.c.h.b16 %v904
    %v1006 = vunpack.c.l.b16 %v905
    %v1007 = vunpack.c.h.b16 %v905
    %v1008 = vunpack.c.l.b16 %v906
    %v1009 = vunpack.c.h.b16 %v906
    %v1010 = vunpack.c.l.b16 %v907
    %v1011 = vunpack.c.h.b16 %v907
    %v1012 = vunpack.c.l.b16 %v908
    %v1013 = vunpack.c.h.b16 %v908
    %v1014 = vunpack.c.l.b16 %v909
    %v1015 = vunpack.c.h.b16 %v909
    %v1016 = vpack.c.b16 %v956, %v952
    %v1017 = vpack.c.b16 %v957, %v953
    %v1018 = vpack.c.b16 %v958, %v954
    %v1019 = vpack.c.b16 %v959, %v955
    %v1020 = vpack.c.b16 %v964, %v960
    %v1021 = vpack.c.b16 %v965, %v961
    %v1022 = vpack.c.b16 %v966, %v962
    %v1023 = vpack.c.b16 %v967, %v963
    %v1024 = vpack.c.b16 %v972, %v968
    %v1025 = vpack.c.b16 %v973, %v969
    %v1026 = vpack.c.b16 %v974, %v970
    %v1027 = vpack.c.b16 %v975, %v971
    %v1028 = vpack.c.b16 %v980, %v976
    %v1029 = vpack.c.b16 %v981, %v977
    %v1030 = vpack.c.b16 %v982, %v978
    %v1031 = vpack.c.b16 %v983, %v979
    %v1032 = vpack.c.b16 %v988, %v984
    %v1033 = vpack.c.b16 %v989, %v985
    %v1034 = vpack.c.b16 %v990, %v986
    %v1035 = vpack.c.b16 %v991, %v987
    %v1036 = vpack.c.b16 %v996, %v992
    %v1037 = vpack.c.b16 %v997, %v993
    %v1038 = vpack.c.b16 %v998, %v994
    %v1039 = vpack.c.b16 %v999, %v995
    %v1040 = vpack.c.b16 %v1004, %v1000
    %v1041 = vpack.c.b16 %v1005, %v1001
    %v1042 = vpack.c.b16 %v1006, %v1002
    %v1043 = vpack.c.b16 %v1007, %v1003
    %v1044 = vpack.c.b16 %v1012, %v1008
    %v1045 = vpack.c.b16 %v1013, %v1009
    %v1046 = vpack.c.b16 %v1014, %v1010
    %v1047 = vpack.c.b16 %v1015, %v1011
    %1080 = vmatpush.bf16.msra.mxu0 %v1044
    %1081 = vmatpush.bf16.msra.mxu0 %v1040
    %1082 = vmatpush.bf16.msra.mxu0 %v1036
    %1083 = vmatpush.bf16.msra.mxu0 %v1032
    %1084 = vmatpush.bf16.msra.mxu0 %v1028
    %1085 = vmatpush.bf16.msra.mxu0 %v1024
    %1086 = vmatpush.bf16.msra.mxu0 %v1020
    %1087 = vmatpush.bf16.msra.mxu0 %v1016
    %1088 = vmatmul.bf16.gmra.mxu0 %v877
    %v1089 = vpop.f32.mrf.mxu0
    %v1090 = vadd.f32 %v912, %v1089
    %v1091 = vpop.f32.mrf.mxu0
    %1092 = vdwg.mxu0
    %1093 = vmatpush.bf16.msra.mxu0 %v1045
    %1094 = vmatpush.bf16.msra.mxu0 %v1041
    %1095 = vmatpush.bf16.msra.mxu0 %v1037
    %1096 = vmatpush.bf16.msra.mxu0 %v1033
    %1097 = vmatpush.bf16.msra.mxu0 %v1029
    %1098 = vmatpush.bf16.msra.mxu0 %v1025
    %1099 = vmatpush.bf16.msra.mxu0 %v1021
    %1100 = vmatpush.bf16.msra.mxu0 %v1017
    %1101 = vmatmul.bf16.gmra.mxu0 %v877
    %v1102 = vpop.f32.mrf.mxu0
    %v1103 = vadd.f32 %v913, %v1102
    %v1104 = vpop.f32.mrf.mxu0
    %1105 = vdwg.mxu0
    %1106 = vmatpush.bf16.msra.mxu0 %v1046
    %1107 = vmatpush.bf16.msra.mxu0 %v1042
    %1108 = vmatpush.bf16.msra.mxu0 %v1038
    %1109 = vmatpush.bf16.msra.mxu0 %v1034
    %1110 = vmatpush.bf16.msra.mxu0 %v1030
    %1111 = vmatpush.bf16.msra.mxu0 %v1026
    %1112 = vmatpush.bf16.msra.mxu0 %v1022
    %1113 = vmatpush.bf16.msra.mxu0 %v1018
    %1114 = vmatmul.bf16.gmra.mxu0 %v877
    %v1115 = vpop.f32.mrf.mxu0
    %v1116 = vadd.f32 %v914, %v1115
    %v1117 = vpop.f32.mrf.mxu0
    %1118 = vdwg.mxu0
    %1119 = vmatpush.bf16.msra.mxu0 %v1047
    %1120 = vmatpush.bf16.msra.mxu0 %v1043
    %1121 = vmatpush.bf16.msra.mxu0 %v1039
    %1122 = vmatpush.bf16.msra.mxu0 %v1035
    %1123 = vmatpush.bf16.msra.mxu0 %v1031
    %1124 = vmatpush.bf16.msra.mxu0 %v1027
    %1125 = vmatpush.bf16.msra.mxu0 %v1023
    %1126 = vmatpush.bf16.msra.mxu0 %v1019
    %1127 = vmatmul.bf16.gmra.mxu0 %v877
    %v1128 = vpop.f32.mrf.mxu0
    %v1129 = vadd.f32 %v915, %v1128
    %v1130 = vpop.f32.mrf.mxu0
    %1131 = vdwg.mxu0
    %v1132 = vadd.f32 %v837, %v1090
    %v1133 = vadd.f32 %v838, %v1103
    %v1134 = vadd.f32 %v839, %v1116
    %v1135 = vadd.f32 %v840, %v1129
    %1136 = vst [vmem:[#allocation14] sm:$0xff] %v1132
    %1137 = vst [vmem:[#allocation14 + $0x8] sm:$0xff] %v1133
    %1138 = vst [vmem:[#allocation14 + $0x10] sm:$0xff] %v1134
    %1139 = vst [vmem:[#allocation14 + $0x18] sm:$0xff] %v1135
    // Predicated region
    $region78: #{tpu_custom_call.1} parent=1 // pred_check
      _
    $region79: #{tpu_custom_call.1} parent=1 // pred_check_branch
      %1141 = sbr.rel (0) target = $region81
    $region80: #{tpu_custom_call.1} parent=1 // pred_region
      %1143 = vsyncadd [#allocation4], 0
      %s1145 = sshll.u32 [#allocation14], 4
      %s1146 = int_to_ptr.vmem [resolvable:$true] %s1145
      %s1147 = sshll.u32 %s12, 4
      %s1148 = int_to_ptr.hbm [resolvable:$true] %s1147
      %1150 = dma.vmem_to_hbm [thread:$0]  %s1146, 512, %s1148, [#allocation4]
    $region81: #{tpu_custom_call.1} parent=1 // pred_fallthru
      _
    // Predicated region
    $region82: #{tpu_custom_call.1} parent=1 // pred_check
      _
    $region83: #{tpu_custom_call.1} parent=1 // pred_check_branch
      %1152 = sbr.rel (0) target = $region85
    $region84: #{tpu_custom_call.1} parent=1 // pred_region
      %1154 = dma.done [#allocation4], 512
    $region85: #{tpu_custom_call.1} parent=1 // pred_fallthru
      _
    %1155 = vsyncpa [#allocation3], 1
    %1156 = vsyncpa [#allocation6], 1
    %1157 = vsyncpa [#allocation9], 1
    %1158 = vsyncpa [#allocation12], 1
    %1159 = vsyncpa [#allocation4], 1

</llo_original>
